<compile_context>
chip_gen: v5e
topology: v5e:2x2
jax: 0.10.0
libtpu: 0.0.40
codegen_flags: <defaults>
</compile_context>

<pallas_src>
import functools
import math

import jax
import jax.numpy as jnp
import numpy as np
from jax.experimental import pallas as pl
from jax.experimental.pallas import tpu as pltpu

_SQRT2_INV = 1.0 / math.sqrt(2.0)

# pywt 'haar' filter bank (dec_lo, dec_hi); rec filters are unused in forward().
_WAVELET_FILTERS = {
    "haar": (
        np.array([_SQRT2_INV, _SQRT2_INV], dtype=np.float32),    # dec_lo
        np.array([-_SQRT2_INV, _SQRT2_INV], dtype=np.float32),   # dec_hi
    ),
}
_WAVELET_FILTERS["db1"] = _WAVELET_FILTERS["haar"]


def _round_up(x, m):
    return ((x + m - 1) // m) * m


def _strided_conv_matrix(filt_flipped, out_len, in_len):
    """M[o, i] = filt_flipped[i - 2*o] (stride-2 cross-correlation as matmul)."""
    n = filt_flipped.shape[0]
    o = jnp.arange(out_len)[:, None]
    i = jnp.arange(in_len)[None, :]
    k = i - 2 * o
    valid = (k >= 0) & (k < n)
    return jnp.where(valid, filt_flipped[jnp.clip(k, 0, n - 1)], 0.0).astype(jnp.float32)


def _dwt_kernel(x_ref, dw_ref, dh_ref, out_ref, *,
                n_planes, tbc, ho, wo, ho_pad, wo_pad):
    """x_ref: (planes, Hp, Wp); dw: (Wp, Wo_pad+Wo); dh: (Ho_pad+Ho, Hp);
    out_ref: (tbb, 4, tbc, Ho, Wo) with subband order LL, LH, HL, HH."""
    dw = dw_ref[...]
    dh = dh_ref[...]
    hp = x_ref.shape[1]
    wp = x_ref.shape[2]

    # Width pass for ALL planes in the block as one big MXU matmul.
    xall = x_ref[...].reshape(n_planes * hp, wp)
    if xall.dtype != dw.dtype:
        xall = xall.astype(dw.dtype)
    t = jnp.dot(xall, dw, preferred_element_type=jnp.float32).astype(dw.dtype)

    # Height pass per plane (short, static unrolled loop).
    for p in range(n_planes):
        bi, ci = divmod(p, tbc)
        tp = t[p * hp:(p + 1) * hp, :]                         # (Hp, Wo_pad+Wo)
        y = jnp.dot(dh, tp, preferred_element_type=jnp.float32)
        y = y.astype(out_ref.dtype)                            # single cast
        out_ref[bi, 0, ci] = y[:ho, :wo]                                   # LL
        out_ref[bi, 1, ci] = y[ho_pad:ho_pad + ho, :wo]                    # LH
        out_ref[bi, 2, ci] = y[:ho, wo_pad:wo_pad + wo]                    # HL
        out_ref[bi, 3, ci] = y[ho_pad:ho_pad + ho, wo_pad:wo_pad + wo]     # HH


def _vmem_capacity_bytes():
    try:
        info = pltpu.get_tpu_info()
        cap = int(getattr(info, "vmem_capacity_bytes", 0))
        if cap > 0:
            return cap
    except Exception:
        pass
    return 64 << 20   # conservative fallback (v7x has 64 MiB / TensorCore)


def _pick_tile(B, C, Hp, Wp, Ho, Wo, wcols, hrows, bpe, filt_bpe,
               vmem_usable, max_planes=32, target_bytes=2 << 20):
    """Pick (tbb, tbc): tbc | C, tbb | B, tbb > 1 only when tbc == C.
    Sized by bytes (target ~2 MB input block) subject to a VMEM budget that
    includes the filter matrices and the f32 width intermediate."""
    fixed = 2 * (Wp * wcols + hrows * Hp) * filt_bpe + (2 << 20)
    per_plane = (2 * (Hp * Wp + 4 * Ho * Wo) * bpe          # in + out blocks, x2 buffers
                 + Hp * wcols * (4 + filt_bpe))              # width intermediate (+ cast)
    budget = max(vmem_usable - fixed, per_plane)

    cands = [(1, tbc) for tbc in range(1, C + 1) if C % tbc == 0]
    cands += [(tbb, C) for tbb in range(2, B + 1) if B % tbb == 0]
    feas = [t for t in cands
            if t[0] * t[1] <= max_planes and t[0] * t[1] * per_plane <= budget]
    if not feas:
        feas = [(1, 1)]

    def planes(t):
        return t[0] * t[1]

    def in_bytes(t):
        return planes(t) * Hp * Wp * bpe

    def nsteps(t):
        return (B // t[0]) * (C // t[1])

    reach = [t for t in feas if in_bytes(t) >= target_bytes]
    pick = min(reach, key=planes) if reach else max(feas, key=planes)
    # Soft preference for >= 2 grid steps (keeps both v7x TensorCores busy),
    # only if it costs at most half the block size.
    if nsteps(pick) < 2:
        alt = [t for t in feas if nsteps(t) >= 2 and 2 * planes(t) >= planes(pick)]
        if alt:
            pick = max(alt, key=planes)
    return pick


def _dwt_level(x, dec_lo, dec_hi, mode):
    """One level of 2D DWT.  x: (B, C, H, W) -> (B, 4*C, H_out, W_out)."""
    B, C, H, W = x.shape
    n = int(dec_lo.shape[0])
    p = (n - 2) // 2
    pad_mode = {"replicate": "edge", "reflect": "reflect",
                "circular": "wrap", "constant": "constant"}[mode]
    if p > 0:
        x = jnp.pad(x, ((0, 0), (0, 0), (p, p), (p, p)), mode=pad_mode)
    Hp, Wp = H + 2 * p, W + 2 * p
    Ho = (Hp - n) // 2 + 1
    Wo = (Wp - n) // 2 + 1
    Ho_pad = _round_up(Ho, 8)      # hi-pass rows start on a sublane-tile boundary
    Wo_pad = _round_up(Wo, 128)    # hi-pass cols start on a lane-tile boundary

    # bf16 inputs -> bf16 filters / MXU inputs (f32 accumulation); else f32.
    filt_dtype = jnp.bfloat16 if x.dtype == jnp.dtype(jnp.bfloat16) else jnp.float32

    # F.conv2d is a cross-correlation with the already-flipped filters.
    flo = dec_lo[::-1]
    fhi = dec_hi[::-1]
    wlo = _strided_conv_matrix(flo, Wo, Wp)            # (Wo, Wp)
    whi = _strided_conv_matrix(fhi, Wo, Wp)            # (Wo, Wp)
    hlo = _strided_conv_matrix(flo, Ho, Hp)            # (Ho, Hp)
    hhi = _strided_conv_matrix(fhi, Ho, Hp)            # (Ho, Hp)
    dw = jnp.concatenate(
        [wlo.T, jnp.zeros((Wp, Wo_pad - Wo), jnp.float32), whi.T],
        axis=1).astype(filt_dtype)                     # (Wp, Wo_pad + Wo)
    dh = jnp.concatenate(
        [hlo, jnp.zeros((Ho_pad - Ho, Hp), jnp.float32), hhi],
        axis=0).astype(filt_dtype)                     # (Ho_pad + Ho, Hp)
    wcols = Wo_pad + Wo
    hrows = Ho_pad + Ho

    bpe = int(jnp.dtype(x.dtype).itemsize)
    filt_bpe = int(jnp.dtype(filt_dtype).itemsize)
    phys = _vmem_capacity_bytes()
    usable = max(min(int(phys * 0.7), 100 << 20), 16 << 20)

    tbb, tbc = _pick_tile(B, C, Hp, Wp, Ho, Wo, wcols, hrows, bpe, filt_bpe, usable)
    n_planes = tbb * tbc
    cblocks = C // tbc
    grid = (B // tbb, cblocks)

    # Flatten (B, C) into a single plane axis; metadata-only reshape in HBM.
    x_flat = x.reshape(B * C, Hp, Wp)

    in_specs = [
        pl.BlockSpec((n_planes, Hp, Wp), lambda bi, ci: (bi * cblocks + ci, 0, 0)),
        pl.BlockSpec((Wp, wcols), lambda bi, ci: (0, 0)),
        pl.BlockSpec((hrows, Hp), lambda bi, ci: (0, 0)),
    ]
    out_spec = pl.BlockSpec((tbb, 4, tbc, Ho, Wo), lambda bi, ci: (bi, 0, ci, 0, 0))
    out_sds = jax.ShapeDtypeStruct((B, 4, C, Ho, Wo), x.dtype)

    vmem_need = (2 * (Wp * wcols + hrows * Hp) * filt_bpe          # filters (x2 buffers)
                 + n_planes * (2 * (Hp * Wp + 4 * Ho * Wo) * bpe   # in/out blocks (x2)
                               + Hp * wcols * (4 + filt_bpe))      # width intermediate
                 + hrows * wcols * 8)                              # per-plane height result
    vmem_limit = int(min(max(vmem_need + (4 << 20), 16 << 20), usable))
    if vmem_limit < vmem_need + (1 << 20):
        vmem_limit = int(min(vmem_need + (2 << 20), phys))

    out = pl.pallas_call(
        functools.partial(_dwt_kernel, n_planes=n_planes, tbc=tbc,
                          ho=Ho, wo=Wo, ho_pad=Ho_pad, wo_pad=Wo_pad),
        out_shape=out_sds,
        grid_spec=pltpu.PrefetchScalarGridSpec(
            num_scalar_prefetch=0,
            grid=grid,
            in_specs=in_specs,
            out_specs=out_spec,
        ),
        compiler_params=pltpu.CompilerParams(
            dimension_semantics=("parallel", "parallel"),
            vmem_limit_bytes=vmem_limit),
    )(x_flat, dw, dh)

    # (B, 4, C, Ho, Wo) -> (B, 4*C, Ho, Wo): contiguous, metadata-only reshape
    # matching torch.cat([xll, xlh, xhl, xhh], dim=1).
    return out.reshape(B, 4 * C, Ho, Wo)


def wavelet_transform_forward(x, in_channels=3, wavelet="haar", maxlevel=1,
                              mode="replicate"):
    """JAX/Pallas equivalent of WaveletTransform(...).forward(x) (= deconstruct).

    Matches the torch module exactly -- each level re-applies the DWT to *all*
    channels (wavelet-packet decomposition, 4**maxlevel leaf nodes)."""
    assert x.shape[1] == in_channels
    mode = "constant" if mode == "zero" else mode
    dec_lo_np, dec_hi_np = _WAVELET_FILTERS[wavelet]
    dec_lo = jnp.asarray(dec_lo_np)
    dec_hi = jnp.asarray(dec_hi_np)
    for _ in range(maxlevel):
        x = _dwt_level(x, dec_lo, dec_hi, mode)
    return x


# ----------------------------- pure-numpy reference -------------------------
def _ref_forward(x, wavelet="haar", maxlevel=1, mode="replicate"):
    dec_lo, dec_hi = _WAVELET_FILTERS[wavelet]
    mode = "constant" if mode == "zero" else mode
    pad_mode = {"replicate": "edge", "reflect": "reflect",
                "circular": "wrap", "constant": "constant"}[mode]
    x = np.asarray(x, dtype=np.float32)
    for _ in range(maxlevel):
        n = len(dec_lo)
        p = (n - 2) // 2
        flo = dec_lo[::-1]
        fhi = dec_hi[::-1]
        if p > 0:
            x = np.pad(x, ((0, 0), (0, 0), (p, p), (p, p)), mode=pad_mode)
        B, C, Hp, Wp = x.shape
        Ho = (Hp - n) // 2 + 1
        Wo = (Wp - n) // 2 + 1

        def conv_w(a, f):
            out = np.zeros(a.shape[:-1] + (Wo,), dtype=np.float32)
            for wo in range(Wo):
                for k in range(n):
                    out[..., wo] += f[k] * a[..., 2 * wo + k]
            return out

        def conv_h(a, f):
            out = np.zeros(a.shape[:2] + (Ho, a.shape[3]), dtype=np.float32)
            for ho in range(Ho):
                for k in range(n):
                    out[:, :, ho, :] += f[k] * a[:, :, 2 * ho + k, :]
            return out

        xl = conv_w(x, flo)
        xh = conv_w(x, fhi)
        x = np.concatenate(
            [conv_h(xl, flo), conv_h(xl, fhi), conv_h(xh, flo), conv_h(xh, fhi)],
            axis=1)
    return x


if __name__ == "__main__":
    B, C, H, W = 2, 4, 16, 16
    key = jax.random.PRNGKey(0)
    x = jax.random.normal(key, (B, C, H, W), dtype=jnp.float32)

    # Level 1.
    out = wavelet_transform_forward(x, in_channels=C, wavelet="haar",
                                    maxlevel=1, mode="replicate")
    out = jax.block_until_ready(out)
    assert out.shape == (B, 4 * C, H // 2, W // 2), out.shape
    ref = _ref_forward(np.asarray(x), wavelet="haar", maxlevel=1, mode="replicate")
    np.testing.assert_allclose(np.asarray(out), ref, rtol=1e-5, atol=1e-5)

    # Level 2 (wavelet-packet over all channels, as in the torch module).
    out2 = wavelet_transform_forward(x, in_channels=C, wavelet="haar",
                                     maxlevel=2, mode="replicate")
    out2 = jax.block_until_ready(out2)
    assert out2.shape == (B, 16 * C, H // 4, W // 4), out2.shape
    ref2 = _ref_forward(np.asarray(x), wavelet="haar", maxlevel=2, mode="replicate")
    np.testing.assert_allclose(np.asarray(out2), ref2, rtol=1e-5, atol=1e-5)

    print("KERNEL_OK")
</pallas_src>

<mosaic_0001>
module attributes {stable_mosaic.version = 11 : i64} {
  func.func @_dwt_kernel(%arg0: i32, %arg1: i32, %arg2: memref<4x16x16xf32, #tpu.memory_space<vmem>>, %arg3: memref<16x136xf32, #tpu.memory_space<vmem>>, %arg4: memref<16x16xf32, #tpu.memory_space<vmem>>, %arg5: memref<1x4x4x8x8xf32, #tpu.memory_space<vmem>>) attributes {dimension_semantics = [#tpu.dimension_semantics<parallel>, #tpu.dimension_semantics<parallel>], iteration_bounds = array<i64: 2, 1>, scalar_prefetch = 0 : i64, scratch_operands = 0 : i64, tpu.core_type = #tpu.core_type<tc>, window_params = [{transform_indices = @transform_0, window_bounds = array<i64: 4, 16, 16>}, {pipeline_mode = #tpu.pipeline_mode<synchronous>, transform_indices = @transform_1, window_bounds = array<i64: 16, 136>}, {pipeline_mode = #tpu.pipeline_mode<synchronous>, transform_indices = @transform_2, window_bounds = array<i64: 16, 16>}, {transform_indices = @transform_3, window_bounds = array<i64: 1, 4, 4, 8, 8>}]} {
    %c0 = arith.constant 0 : index
    %c0_0 = arith.constant 0 : index
    %0 = vector.load %arg3[%c0, %c0_0] : memref<16x136xf32, #tpu.memory_space<vmem>>, vector<16x136xf32>
    %c0_1 = arith.constant 0 : index
    %c0_2 = arith.constant 0 : index
    %1 = vector.load %arg4[%c0_1, %c0_2] : memref<16x16xf32, #tpu.memory_space<vmem>>, vector<16x16xf32>
    %c0_3 = arith.constant 0 : index
    %c0_4 = arith.constant 0 : index
    %c0_5 = arith.constant 0 : index
    %2 = vector.load %arg2[%c0_3, %c0_4, %c0_5] : memref<4x16x16xf32, #tpu.memory_space<vmem>>, vector<4x16x16xf32>
    %3 = vector.shape_cast %2 : vector<4x16x16xf32> to vector<64x16xf32>
    %cst = arith.constant dense<0.000000e+00> : vector<64x136xf32>
    %4 = tpu.matmul %3, %0, %cst {dimension_numbers = #tpu.dot_dimension_numbers<[1], [0], [0], [1], [0, 0, 1, 1], [], []>} : vector<64x16xf32>, vector<16x136xf32>, vector<64x136xf32> -> vector<64x136xf32>
    %5 = vector.extract_strided_slice %4 {offsets = [0, 0], sizes = [16, 136], strides = [1, 1]} : vector<64x136xf32> to vector<16x136xf32>
    %cst_6 = arith.constant dense<0.000000e+00> : vector<16x136xf32>
    %6 = tpu.matmul %1, %5, %cst_6 {dimension_numbers = #tpu.dot_dimension_numbers<[1], [0], [0], [1], [0, 0, 1, 1], [], []>} : vector<16x16xf32>, vector<16x136xf32>, vector<16x136xf32> -> vector<16x136xf32>
    %7 = vector.extract_strided_slice %6 {offsets = [0, 0], sizes = [8, 8], strides = [1, 1]} : vector<16x136xf32> to vector<8x8xf32>
    %c0_7 = arith.constant 0 : index
    %c0_8 = arith.constant 0 : index
    %c0_9 = arith.constant 0 : index
    %c0_10 = arith.constant 0 : index
    %c0_11 = arith.constant 0 : index
    %8 = vector.load %arg5[%c0_7, %c0_8, %c0_9, %c0_10, %c0_11] : memref<1x4x4x8x8xf32, #tpu.memory_space<vmem>>, vector<1x1x1x8x8xf32>
    %9 = vector.shape_cast %8 : vector<1x1x1x8x8xf32> to vector<8x8xf32>
    %10 = vector.shape_cast %7 : vector<8x8xf32> to vector<1x1x1x8x8xf32>
    tpu.vector_store %arg5[%c0_7, %c0_8, %c0_9, %c0_10, %c0_11], %10 {strides = array<i32>} : memref<1x4x4x8x8xf32, #tpu.memory_space<vmem>>, vector<1x1x1x8x8xf32>,
    %11 = vector.extract_strided_slice %6 {offsets = [8, 0], sizes = [8, 8], strides = [1, 1]} : vector<16x136xf32> to vector<8x8xf32>
    %c0_12 = arith.constant 0 : index
    %c1 = arith.constant 1 : index
    %c0_13 = arith.constant 0 : index
    %c0_14 = arith.constant 0 : index
    %c0_15 = arith.constant 0 : index
    %12 = vector.load %arg5[%c0_12, %c1, %c0_13, %c0_14, %c0_15] : memref<1x4x4x8x8xf32, #tpu.memory_space<vmem>>, vector<1x1x1x8x8xf32>
    %13 = vector.shape_cast %12 : vector<1x1x1x8x8xf32> to vector<8x8xf32>
    %14 = vector.shape_cast %11 : vector<8x8xf32> to vector<1x1x1x8x8xf32>
    tpu.vector_store %arg5[%c0_12, %c1, %c0_13, %c0_14, %c0_15], %14 {strides = array<i32>} : memref<1x4x4x8x8xf32, #tpu.memory_space<vmem>>, vector<1x1x1x8x8xf32>,
    %15 = vector.extract_strided_slice %6 {offsets = [0, 128], sizes = [8, 8], strides = [1, 1]} : vector<16x136xf32> to vector<8x8xf32>
    %c0_16 = arith.constant 0 : index
    %c2 = arith.constant 2 : index
    %c0_17 = arith.constant 0 : index
    %c0_18 = arith.constant 0 : index
    %c0_19 = arith.constant 0 : index
    %16 = vector.load %arg5[%c0_16, %c2, %c0_17, %c0_18, %c0_19] : memref<1x4x4x8x8xf32, #tpu.memory_space<vmem>>, vector<1x1x1x8x8xf32>
    %17 = vector.shape_cast %16 : vector<1x1x1x8x8xf32> to vector<8x8xf32>
    %18 = vector.shape_cast %15 : vector<8x8xf32> to vector<1x1x1x8x8xf32>
    tpu.vector_store %arg5[%c0_16, %c2, %c0_17, %c0_18, %c0_19], %18 {strides = array<i32>} : memref<1x4x4x8x8xf32, #tpu.memory_space<vmem>>, vector<1x1x1x8x8xf32>,
    %19 = vector.extract_strided_slice %6 {offsets = [8, 128], sizes = [8, 8], strides = [1, 1]} : vector<16x136xf32> to vector<8x8xf32>
    %c0_20 = arith.constant 0 : index
    %c3 = arith.constant 3 : index
    %c0_21 = arith.constant 0 : index
    %c0_22 = arith.constant 0 : index
    %c0_23 = arith.constant 0 : index
    %20 = vector.load %arg5[%c0_20, %c3, %c0_21, %c0_22, %c0_23] : memref<1x4x4x8x8xf32, #tpu.memory_space<vmem>>, vector<1x1x1x8x8xf32>
    %21 = vector.shape_cast %20 : vector<1x1x1x8x8xf32> to vector<8x8xf32>
    %22 = vector.shape_cast %19 : vector<8x8xf32> to vector<1x1x1x8x8xf32>
    tpu.vector_store %arg5[%c0_20, %c3, %c0_21, %c0_22, %c0_23], %22 {strides = array<i32>} : memref<1x4x4x8x8xf32, #tpu.memory_space<vmem>>, vector<1x1x1x8x8xf32>,
    %23 = vector.extract_strided_slice %4 {offsets = [16, 0], sizes = [16, 136], strides = [1, 1]} : vector<64x136xf32> to vector<16x136xf32>
    %cst_24 = arith.constant dense<0.000000e+00> : vector<16x136xf32>
    %24 = tpu.matmul %1, %23, %cst_24 {dimension_numbers = #tpu.dot_dimension_numbers<[1], [0], [0], [1], [0, 0, 1, 1], [], []>} : vector<16x16xf32>, vector<16x136xf32>, vector<16x136xf32> -> vector<16x136xf32>
    %25 = vector.extract_strided_slice %24 {offsets = [0, 0], sizes = [8, 8], strides = [1, 1]} : vector<16x136xf32> to vector<8x8xf32>
    %c0_25 = arith.constant 0 : index
    %c0_26 = arith.constant 0 : index
    %c1_27 = arith.constant 1 : index
    %c0_28 = arith.constant 0 : index
    %c0_29 = arith.constant 0 : index
    %26 = vector.load %arg5[%c0_25, %c0_26, %c1_27, %c0_28, %c0_29] : memref<1x4x4x8x8xf32, #tpu.memory_space<vmem>>, vector<1x1x1x8x8xf32>
    %27 = vector.shape_cast %26 : vector<1x1x1x8x8xf32> to vector<8x8xf32>
    %28 = vector.shape_cast %25 : vector<8x8xf32> to vector<1x1x1x8x8xf32>
    tpu.vector_store %arg5[%c0_25, %c0_26, %c1_27, %c0_28, %c0_29], %28 {strides = array<i32>} : memref<1x4x4x8x8xf32, #tpu.memory_space<vmem>>, vector<1x1x1x8x8xf32>,
    %29 = vector.extract_strided_slice %24 {offsets = [8, 0], sizes = [8, 8], strides = [1, 1]} : vector<16x136xf32> to vector<8x8xf32>
    %c0_30 = arith.constant 0 : index
    %c1_31 = arith.constant 1 : index
    %c1_32 = arith.constant 1 : index
    %c0_33 = arith.constant 0 : index
    %c0_34 = arith.constant 0 : index
    %30 = vector.load %arg5[%c0_30, %c1_31, %c1_32, %c0_33, %c0_34] : memref<1x4x4x8x8xf32, #tpu.memory_space<vmem>>, vector<1x1x1x8x8xf32>
    %31 = vector.shape_cast %30 : vector<1x1x1x8x8xf32> to vector<8x8xf32>
    %32 = vector.shape_cast %29 : vector<8x8xf32> to vector<1x1x1x8x8xf32>
    tpu.vector_store %arg5[%c0_30, %c1_31, %c1_32, %c0_33, %c0_34], %32 {strides = array<i32>} : memref<1x4x4x8x8xf32, #tpu.memory_space<vmem>>, vector<1x1x1x8x8xf32>,
    %33 = vector.extract_strided_slice %24 {offsets = [0, 128], sizes = [8, 8], strides = [1, 1]} : vector<16x136xf32> to vector<8x8xf32>
    %c0_35 = arith.constant 0 : index
    %c2_36 = arith.constant 2 : index
    %c1_37 = arith.constant 1 : index
    %c0_38 = arith.constant 0 : index
    %c0_39 = arith.constant 0 : index
    %34 = vector.load %arg5[%c0_35, %c2_36, %c1_37, %c0_38, %c0_39] : memref<1x4x4x8x8xf32, #tpu.memory_space<vmem>>, vector<1x1x1x8x8xf32>
    %35 = vector.shape_cast %34 : vector<1x1x1x8x8xf32> to vector<8x8xf32>
    %36 = vector.shape_cast %33 : vector<8x8xf32> to vector<1x1x1x8x8xf32>
    tpu.vector_store %arg5[%c0_35, %c2_36, %c1_37, %c0_38, %c0_39], %36 {strides = array<i32>} : memref<1x4x4x8x8xf32, #tpu.memory_space<vmem>>, vector<1x1x1x8x8xf32>,
    %37 = vector.extract_strided_slice %24 {offsets = [8, 128], sizes = [8, 8], strides = [1, 1]} : vector<16x136xf32> to vector<8x8xf32>
    %c0_40 = arith.constant 0 : index
    %c3_41 = arith.constant 3 : index
    %c1_42 = arith.constant 1 : index
    %c0_43 = arith.constant 0 : index
    %c0_44 = arith.constant 0 : index
    %38 = vector.load %arg5[%c0_40, %c3_41, %c1_42, %c0_43, %c0_44] : memref<1x4x4x8x8xf32, #tpu.memory_space<vmem>>, vector<1x1x1x8x8xf32>
    %39 = vector.shape_cast %38 : vector<1x1x1x8x8xf32> to vector<8x8xf32>
    %40 = vector.shape_cast %37 : vector<8x8xf32> to vector<1x1x1x8x8xf32>
    tpu.vector_store %arg5[%c0_40, %c3_41, %c1_42, %c0_43, %c0_44], %40 {strides = array<i32>} : memref<1x4x4x8x8xf32, #tpu.memory_space<vmem>>, vector<1x1x1x8x8xf32>,
    %41 = vector.extract_strided_slice %4 {offsets = [32, 0], sizes = [16, 136], strides = [1, 1]} : vector<64x136xf32> to vector<16x136xf32>
    %cst_45 = arith.constant dense<0.000000e+00> : vector<16x136xf32>
    %42 = tpu.matmul %1, %41, %cst_45 {dimension_numbers = #tpu.dot_dimension_numbers<[1], [0], [0], [1], [0, 0, 1, 1], [], []>} : vector<16x16xf32>, vector<16x136xf32>, vector<16x136xf32> -> vector<16x136xf32>
    %43 = vector.extract_strided_slice %42 {offsets = [0, 0], sizes = [8, 8], strides = [1, 1]} : vector<16x136xf32> to vector<8x8xf32>
    %c0_46 = arith.constant 0 : index
    %c0_47 = arith.constant 0 : index
    %c2_48 = arith.constant 2 : index
    %c0_49 = arith.constant 0 : index
    %c0_50 = arith.constant 0 : index
    %44 = vector.load %arg5[%c0_46, %c0_47, %c2_48, %c0_49, %c0_50] : memref<1x4x4x8x8xf32, #tpu.memory_space<vmem>>, vector<1x1x1x8x8xf32>
    %45 = vector.shape_cast %44 : vector<1x1x1x8x8xf32> to vector<8x8xf32>
    %46 = vector.shape_cast %43 : vector<8x8xf32> to vector<1x1x1x8x8xf32>
    tpu.vector_store %arg5[%c0_46, %c0_47, %c2_48, %c0_49, %c0_50], %46 {strides = array<i32>} : memref<1x4x4x8x8xf32, #tpu.memory_space<vmem>>, vector<1x1x1x8x8xf32>,
    %47 = vector.extract_strided_slice %42 {offsets = [8, 0], sizes = [8, 8], strides = [1, 1]} : vector<16x136xf32> to vector<8x8xf32>
    %c0_51 = arith.constant 0 : index
    %c1_52 = arith.constant 1 : index
    %c2_53 = arith.constant 2 : index
    %c0_54 = arith.constant 0 : index
    %c0_55 = arith.constant 0 : index
    %48 = vector.load %arg5[%c0_51, %c1_52, %c2_53, %c0_54, %c0_55] : memref<1x4x4x8x8xf32, #tpu.memory_space<vmem>>, vector<1x1x1x8x8xf32>
    %49 = vector.shape_cast %48 : vector<1x1x1x8x8xf32> to vector<8x8xf32>
    %50 = vector.shape_cast %47 : vector<8x8xf32> to vector<1x1x1x8x8xf32>
    tpu.vector_store %arg5[%c0_51, %c1_52, %c2_53, %c0_54, %c0_55], %50 {strides = array<i32>} : memref<1x4x4x8x8xf32, #tpu.memory_space<vmem>>, vector<1x1x1x8x8xf32>,
    %51 = vector.extract_strided_slice %42 {offsets = [0, 128], sizes = [8, 8], strides = [1, 1]} : vector<16x136xf32> to vector<8x8xf32>
    %c0_56 = arith.constant 0 : index
    %c2_57 = arith.constant 2 : index
    %c2_58 = arith.constant 2 : index
    %c0_59 = arith.constant 0 : index
    %c0_60 = arith.constant 0 : index
    %52 = vector.load %arg5[%c0_56, %c2_57, %c2_58, %c0_59, %c0_60] : memref<1x4x4x8x8xf32, #tpu.memory_space<vmem>>, vector<1x1x1x8x8xf32>
    %53 = vector.shape_cast %52 : vector<1x1x1x8x8xf32> to vector<8x8xf32>
    %54 = vector.shape_cast %51 : vector<8x8xf32> to vector<1x1x1x8x8xf32>
    tpu.vector_store %arg5[%c0_56, %c2_57, %c2_58, %c0_59, %c0_60], %54 {strides = array<i32>} : memref<1x4x4x8x8xf32, #tpu.memory_space<vmem>>, vector<1x1x1x8x8xf32>,
    %55 = vector.extract_strided_slice %42 {offsets = [8, 128], sizes = [8, 8], strides = [1, 1]} : vector<16x136xf32> to vector<8x8xf32>
    %c0_61 = arith.constant 0 : index
    %c3_62 = arith.constant 3 : index
    %c2_63 = arith.constant 2 : index
    %c0_64 = arith.constant 0 : index
    %c0_65 = arith.constant 0 : index
    %56 = vector.load %arg5[%c0_61, %c3_62, %c2_63, %c0_64, %c0_65] : memref<1x4x4x8x8xf32, #tpu.memory_space<vmem>>, vector<1x1x1x8x8xf32>
    %57 = vector.shape_cast %56 : vector<1x1x1x8x8xf32> to vector<8x8xf32>
    %58 = vector.shape_cast %55 : vector<8x8xf32> to vector<1x1x1x8x8xf32>
    tpu.vector_store %arg5[%c0_61, %c3_62, %c2_63, %c0_64, %c0_65], %58 {strides = array<i32>} : memref<1x4x4x8x8xf32, #tpu.memory_space<vmem>>, vector<1x1x1x8x8xf32>,
    %59 = vector.extract_strided_slice %4 {offsets = [48, 0], sizes = [16, 136], strides = [1, 1]} : vector<64x136xf32> to vector<16x136xf32>
    %cst_66 = arith.constant dense<0.000000e+00> : vector<16x136xf32>
    %60 = tpu.matmul %1, %59, %cst_66 {dimension_numbers = #tpu.dot_dimension_numbers<[1], [0], [0], [1], [0, 0, 1, 1], [], []>} : vector<16x16xf32>, vector<16x136xf32>, vector<16x136xf32> -> vector<16x136xf32>
    %61 = vector.extract_strided_slice %60 {offsets = [0, 0], sizes = [8, 8], strides = [1, 1]} : vector<16x136xf32> to vector<8x8xf32>
    %c0_67 = arith.constant 0 : index
    %c0_68 = arith.constant 0 : index
    %c3_69 = arith.constant 3 : index
    %c0_70 = arith.constant 0 : index
    %c0_71 = arith.constant 0 : index
    %62 = vector.load %arg5[%c0_67, %c0_68, %c3_69, %c0_70, %c0_71] : memref<1x4x4x8x8xf32, #tpu.memory_space<vmem>>, vector<1x1x1x8x8xf32>
    %63 = vector.shape_cast %62 : vector<1x1x1x8x8xf32> to vector<8x8xf32>
    %64 = vector.shape_cast %61 : vector<8x8xf32> to vector<1x1x1x8x8xf32>
    tpu.vector_store %arg5[%c0_67, %c0_68, %c3_69, %c0_70, %c0_71], %64 {strides = array<i32>} : memref<1x4x4x8x8xf32, #tpu.memory_space<vmem>>, vector<1x1x1x8x8xf32>,
    %65 = vector.extract_strided_slice %60 {offsets = [8, 0], sizes = [8, 8], strides = [1, 1]} : vector<16x136xf32> to vector<8x8xf32>
    %c0_72 = arith.constant 0 : index
    %c1_73 = arith.constant 1 : index
    %c3_74 = arith.constant 3 : index
    %c0_75 = arith.constant 0 : index
    %c0_76 = arith.constant 0 : index
    %66 = vector.load %arg5[%c0_72, %c1_73, %c3_74, %c0_75, %c0_76] : memref<1x4x4x8x8xf32, #tpu.memory_space<vmem>>, vector<1x1x1x8x8xf32>
    %67 = vector.shape_cast %66 : vector<1x1x1x8x8xf32> to vector<8x8xf32>
    %68 = vector.shape_cast %65 : vector<8x8xf32> to vector<1x1x1x8x8xf32>
    tpu.vector_store %arg5[%c0_72, %c1_73, %c3_74, %c0_75, %c0_76], %68 {strides = array<i32>} : memref<1x4x4x8x8xf32, #tpu.memory_space<vmem>>, vector<1x1x1x8x8xf32>,
    %69 = vector.extract_strided_slice %60 {offsets = [0, 128], sizes = [8, 8], strides = [1, 1]} : vector<16x136xf32> to vector<8x8xf32>
    %c0_77 = arith.constant 0 : index
    %c2_78 = arith.constant 2 : index
    %c3_79 = arith.constant 3 : index
    %c0_80 = arith.constant 0 : index
    %c0_81 = arith.constant 0 : index
    %70 = vector.load %arg5[%c0_77, %c2_78, %c3_79, %c0_80, %c0_81] : memref<1x4x4x8x8xf32, #tpu.memory_space<vmem>>, vector<1x1x1x8x8xf32>
    %71 = vector.shape_cast %70 : vector<1x1x1x8x8xf32> to vector<8x8xf32>
    %72 = vector.shape_cast %69 : vector<8x8xf32> to vector<1x1x1x8x8xf32>
    tpu.vector_store %arg5[%c0_77, %c2_78, %c3_79, %c0_80, %c0_81], %72 {strides = array<i32>} : memref<1x4x4x8x8xf32, #tpu.memory_space<vmem>>, vector<1x1x1x8x8xf32>,
    %73 = vector.extract_strided_slice %60 {offsets = [8, 128], sizes = [8, 8], strides = [1, 1]} : vector<16x136xf32> to vector<8x8xf32>
    %c0_82 = arith.constant 0 : index
    %c3_83 = arith.constant 3 : index
    %c3_84 = arith.constant 3 : index
    %c0_85 = arith.constant 0 : index
    %c0_86 = arith.constant 0 : index
    %74 = vector.load %arg5[%c0_82, %c3_83, %c3_84, %c0_85, %c0_86] : memref<1x4x4x8x8xf32, #tpu.memory_space<vmem>>, vector<1x1x1x8x8xf32>
    %75 = vector.shape_cast %74 : vector<1x1x1x8x8xf32> to vector<8x8xf32>
    %76 = vector.shape_cast %73 : vector<8x8xf32> to vector<1x1x1x8x8xf32>
    tpu.vector_store %arg5[%c0_82, %c3_83, %c3_84, %c0_85, %c0_86], %76 {strides = array<i32>} : memref<1x4x4x8x8xf32, #tpu.memory_space<vmem>>, vector<1x1x1x8x8xf32>,
    return
  }
  func.func @transform_0(%arg0: i32, %arg1: i32) -> (i32, i32, i32) {
    %c1_i32 = arith.constant 1 : i32
    %0 = arith.muli %arg0, %c1_i32 : i32
    %1 = arith.addi %0, %arg1 : i32
    %c0_i32 = arith.constant 0 : i32
    %c0_i32_0 = arith.constant 0 : i32
    %c0_i32_1 = arith.constant 0 : i32
    return %1, %c0_i32, %c0_i32_0 : i32, i32, i32
  }
  func.func @transform_1(%arg0: i32, %arg1: i32) -> (i32, i32) {
    %c0_i32 = arith.constant 0 : i32
    %c0_i32_0 = arith.constant 0 : i32
    %c0_i32_1 = arith.constant 0 : i32
    return %c0_i32, %c0_i32_0 : i32, i32
  }
  func.func @transform_2(%arg0: i32, %arg1: i32) -> (i32, i32) {
    %c0_i32 = arith.constant 0 : i32
    %c0_i32_0 = arith.constant 0 : i32
    %c0_i32_1 = arith.constant 0 : i32
    return %c0_i32, %c0_i32_0 : i32, i32
  }
  func.func @transform_3(%arg0: i32, %arg1: i32) -> (i32, i32, i32, i32, i32) {
    %c0_i32 = arith.constant 0 : i32
    %c0_i32_0 = arith.constant 0 : i32
    %c0_i32_1 = arith.constant 0 : i32
    %c0_i32_2 = arith.constant 0 : i32
    return %arg0, %c0_i32, %arg1, %c0_i32_0, %c0_i32_1 : i32, i32, i32, i32, i32
  }
}

</mosaic_0001>

<llo_original>
// kernel: tpu_custom_call.1
$region0: #{tpu_custom_call.1}
  #allocation0 [shape = 'u32[]', space=smem, size = 0x4, offset = 0x4, fixed_abs, tag = 'smem constant byte address 0x4 - core index']
  #allocation1 [shape = 'u32[72,128]{1,0:T(1,128)}', space=vmem, size = 0x9000, scoped, tag = 'internal scratch']
  %s0 = inlined_call_operand.hbm [shape: f32[8,16,16], index: 0, kind: input, shape index: {}]
  %s1 = inlined_call_operand.hbm [shape: f32[16,136], index: 1, kind: input, shape index: {}]
  %s2 = inlined_call_operand.hbm [shape: f32[16,16], index: 2, kind: input, shape index: {}]
  %s3 = inlined_call_operand.hbm [shape: f32[2,4,4,8,8], index: 3, kind: output, shape index: {}]
  %s4 = sld [smem:[#allocation0]]
  $region57: #{tpu_custom_call.1} parent=0
    _
  %s6 = ssub.s32 1, %s4
  %s7 = scalar_select 0, %s6, %s4
  $region1: #{tpu_custom_call.1} parent=0
    #allocation2 [shape = 'u8[65536]{0}', space=vmem, size = 0x10000, scoped, tag = 'input window, operand 0']
    #allocation3 [shape = 's32[2]{0}', space=sflag, size = 0x8, scoped, tag = 'scoped memory for tpu_custom_call.1']
    #allocation4 [shape = 's32[2]{0}', space=sflag, size = 0x8, scoped, tag = 'scoped memory for tpu_custom_call.1']
    #allocation5 [shape = 'u8[16384]{0}', space=vmem, size = 0x4000, scoped, tag = 'input window, operand 1, single buffered']
    #allocation6 [shape = 's32[1]{0}', space=sflag, size = 0x4, scoped, tag = 'scoped memory for tpu_custom_call.1']
    #allocation7 [shape = 'u8[8192]{0}', space=vmem, size = 0x2000, scoped, tag = 'input window, operand 2, single buffered']
    #allocation8 [shape = 'u8[131072]{0}', space=vmem, size = 0x20000, scoped, tag = 'output window, operand 0']
    %8 = vsyncpa [#allocation3], 0
    %s9 = scalar_lea.sflag [#allocation3], 1
    %10 = vsyncpa %s9, 0
    %11 = vsyncpa [#allocation6], 0
    %12 = vsyncpa [#allocation4], 0
    %s13 = scalar_lea.sflag [#allocation4], 1
    %14 = vsyncpa %s13, 0
    loop: start=0, step=1, limit=4
    $region2: #{tpu_custom_call.1} parent=1 // loop_pre_header
      _
    $region3: #{tpu_custom_call.1} parent=1 // loop_header
      %s16 = sphi 0, %s20
      %p17 = scmp.ge.s32.totalorder %s16, 4
      %s23 = sphi 0, %s35
      %s24 = sphi 0, %s31
      %s25 = sphi 0, %s23
      %s26 = sphi 0, %s24
      %s27 = sphi 0, %s25
      %s28 = sphi 0, %s26
      %s40 = sphi 0, %s42
      %s43 = sphi 0, %s40
      %s44 = sphi 0, %s43
      %s60 = sphi 0, %s44
      %s64 = sphi 0, %s64
      %s66 = sphi 0, %s64
      %s67 = sphi 0, %s66
      %s81 = sphi 0, %s67
      %s85 = sphi 0, %s85
      %s87 = sphi 0, %s85
      %s88 = sphi 0, %s87
      %s102 = sphi 0, %s88
      %s110 = sphi 0, %s112
      %s113 = sphi 0, %s110
      %s114 = sphi 0, %s113
      %s130 = sphi 0, %s114
    $region4: #{tpu_custom_call.1} parent=1 // loop_header_branch
      %19 = sbr.rel (%p17) target = $region8
    $region5: #{tpu_custom_call.1} parent=1 // loop_body
      %s21 = ssub.s32 %s16, 1
      %s22 = ssub.s32 %s16, 2
      %s29 = sadd.s32 1, %s24
      %p30 = scmp.ge.s32.totalorder %s29, 1
      %s31 = scalar_select %p30, 0, %s29
      %s32 = sadd.s32 1, %s23
      %s33 = scalar_select %p30, %s32, %s23
      %p34 = scmp.ge.s32.totalorder %s33, 2
      %s35 = scalar_select %p34, 0, %s33
      %s36 = sadd.s32 %s23, %s24
      %s37 = sadd.s32 %s35, %s31
      %s38 = ssub.s32 %s36, %s37
      %p39 = scmp.eq.s32.totalorder %s38, 0
      %s41 = sadd.s32 %s40, 1
      %s42 = scalar_select %p39, %s40, %s41
      %p45 = pneg %p39
      %p46 = scmp.eq.s32.totalorder %s16, 1
      %p47 = por %p45, %p46
      %p48 = scmp.ne.s32.totalorder %s40, %s43
      %p49 = scmp.eq.s32.totalorder %s16, 0
      %p50 = por %p48, %p49
      %p51 = scmp.ne.s32.totalorder %s40, %s43
      %p52 = scmp.eq.s32.totalorder %s21, 1
      %p53 = por %p51, %p52
      %p54 = scmp.ne.s32.totalorder %s43, %s44
      %p55 = scmp.eq.s32.totalorder %s21, 0
      %p56 = por %p54, %p55
      %p57 = scmp.ne.s32.totalorder %s43, %s44
      %p58 = scmp.eq.s32.totalorder %s22, 1
      %p59 = por %p57, %p58
      %p61 = scmp.ne.s32.totalorder %s44, %s60
      %p62 = scmp.eq.s32.totalorder %s22, 0
      %p63 = por %p61, %p62
      %s65 = sadd.s32 %s64, 1
      %p68 = scmp.eq.s32.totalorder %s16, 1
      %p69 = scmp.ne.s32.totalorder %s64, %s66
      %p70 = scmp.eq.s32.totalorder %s16, 0
      %p71 = por %p69, %p70
      %p72 = scmp.ne.s32.totalorder %s64, %s66
      %p73 = scmp.eq.s32.totalorder %s21, 1
      %p74 = por %p72, %p73
      %p75 = scmp.ne.s32.totalorder %s66, %s67
      %p76 = scmp.eq.s32.totalorder %s21, 0
      %p77 = por %p75, %p76
      %p78 = scmp.ne.s32.totalorder %s66, %s67
      %p79 = scmp.eq.s32.totalorder %s22, 1
      %p80 = por %p78, %p79
      %p82 = scmp.ne.s32.totalorder %s67, %s81
      %p83 = scmp.eq.s32.totalorder %s22, 0
      %p84 = por %p82, %p83
      %s86 = sadd.s32 %s85, 1
      %p89 = scmp.eq.s32.totalorder %s16, 1
      %p90 = scmp.ne.s32.totalorder %s85, %s87
      %p91 = scmp.eq.s32.totalorder %s16, 0
      %p92 = por %p90, %p91
      %p93 = scmp.ne.s32.totalorder %s85, %s87
      %p94 = scmp.eq.s32.totalorder %s21, 1
      %p95 = por %p93, %p94
      %p96 = scmp.ne.s32.totalorder %s87, %s88
      %p97 = scmp.eq.s32.totalorder %s21, 0
      %p98 = por %p96, %p97
      %p99 = scmp.ne.s32.totalorder %s87, %s88
      %p100 = scmp.eq.s32.totalorder %s22, 1
      %p101 = por %p99, %p100
      %p103 = scmp.ne.s32.totalorder %s88, %s102
      %p104 = scmp.eq.s32.totalorder %s22, 0
      %p105 = por %p103, %p104
      %s106 = ssub.s32 %s23, %s35
      %s107 = ssub.s32 %s24, %s31
      %s108 = sor.u32 %s106, %s107
      %p109 = scmp.eq.s32.totalorder %s108, 0
      %s111 = sadd.s32 %s110, 1
      %s112 = scalar_select %p109, %s110, %s111
      %p115 = pneg %p109
      %p116 = scmp.eq.s32.totalorder %s16, 1
      %p117 = por %p115, %p116
      %p118 = scmp.ne.s32.totalorder %s110, %s113
      %p119 = scmp.eq.s32.totalorder %s16, 0
      %p120 = por %p118, %p119
      %p121 = scmp.ne.s32.totalorder %s110, %s113
      %p122 = scmp.eq.s32.totalorder %s21, 1
      %p123 = por %p121, %p122
      %p124 = scmp.ne.s32.totalorder %s113, %s114
      %p125 = scmp.eq.s32.totalorder %s21, 0
      %p126 = por %p124, %p125
      %p127 = scmp.ne.s32.totalorder %s113, %s114
      %p128 = scmp.eq.s32.totalorder %s22, 1
      %p129 = por %p127, %p128
      %p131 = scmp.ne.s32.totalorder %s114, %s130
      %p132 = scmp.eq.s32.totalorder %s22, 0
      %p133 = por %p131, %p132
      %p134 = scmp.le.s32.totalorder 1, %s16
      %p135 = scmp.lt.s32.totalorder %s16, 3
      %p136 = pnand %p134, %p135
      %p137 = pneg %p136
      // Predicated region
      $region9: #{tpu_custom_call.1} parent=5 // pred_check
        _
      $region10: #{tpu_custom_call.1} parent=5 // pred_check_branch
        %139 = sbr.rel (%p136) target = $region12
      $region11: #{tpu_custom_call.1} parent=5 // pred_region
        %s140 = ssub.s32 %s16, 1
        // Predicated region
        $region13: #{tpu_custom_call.1} parent=11 // pred_check
          %p141 = pneg %p77
        $region14: #{tpu_custom_call.1} parent=11 // pred_check_branch
          %143 = sbr.rel (%p141) target = $region16
        $region15: #{tpu_custom_call.1} parent=11 // pred_region
          %145 = vsyncadd [#allocation6], 0
          %s146 = sshll.u32 %s1, 4
          %s147 = int_to_ptr.hbm [resolvable:$true] %s146
          %s148 = sshll.u32 [#allocation5], 4
          %s149 = int_to_ptr.vmem [resolvable:$true] %s148
          %154 = dma.hbm_to_vmem [thread:$0]  %s147, 512, %s149, [#allocation6], 256, 256, 16
        $region16: #{tpu_custom_call.1} parent=11 // pred_fallthru
          _
        // Predicated region
        $region17: #{tpu_custom_call.1} parent=11 // pred_check
          %p155 = pneg %p98
        $region18: #{tpu_custom_call.1} parent=11 // pred_check_branch
          %157 = sbr.rel (%p155) target = $region20
        $region19: #{tpu_custom_call.1} parent=11 // pred_region
          %159 = vsyncadd [#allocation6], 0
          %s160 = sshll.u32 %s2, 4
          %s161 = int_to_ptr.hbm [resolvable:$true] %s160
          %s162 = sshll.u32 [#allocation7], 4
          %s163 = int_to_ptr.vmem [resolvable:$true] %s162
          %168 = dma.hbm_to_vmem [thread:$0]  %s161, 256, %s163, [#allocation6], 128, 128, 8
        $region20: #{tpu_custom_call.1} parent=11 // pred_fallthru
          _
      $region12: #{tpu_custom_call.1} parent=5 // pred_fallthru
        _
      %p169 = scmp.lt.s32.totalorder %s16, 2
      // Predicated region
      $region21: #{tpu_custom_call.1} parent=5 // pred_check
        %p170 = pneg %p169
      $region22: #{tpu_custom_call.1} parent=5 // pred_check_branch
        %172 = sbr.rel (%p170) target = $region24
      $region23: #{tpu_custom_call.1} parent=5 // pred_region
        // Predicated region
        $region25: #{tpu_custom_call.1} parent=23 // pred_check
          %p173 = pneg %p50
        $region26: #{tpu_custom_call.1} parent=23 // pred_check_branch
          %175 = sbr.rel (%p173) target = $region28
        $region27: #{tpu_custom_call.1} parent=23 // pred_region
          %s176 = sand.u32 %s40, 1
          %s177 = scalar_lea.sflag [#allocation3], %s176
          %s178 = sand.u32 %s40, 1
          %s179 = smul.addr %s178, 64
          %s180 = scalar_lea.vmem [#allocation2], %s179
          %s181 = sadd.s32 %s23, %s24
          %s182 = smul.u32 4, %s181
          %184 = vsyncadd %s177, 0
          %s185 = smul.addr %s182, 2
          %s186 = smul.addr %s185, 8
          %s187 = scalar_lea.hbm %s0, %s186
          %s188 = sshll.u32 %s187, 4
          %s189 = int_to_ptr.hbm [resolvable:$true] %s188
          %s190 = sshll.u32 %s180, 4
          %s191 = int_to_ptr.vmem [resolvable:$true] %s190
          %196 = dma.hbm_to_vmem [thread:$0]  %s189, 1024, %s191, %s177, 128, 128, 8
        $region28: #{tpu_custom_call.1} parent=23 // pred_fallthru
          _
      $region24: #{tpu_custom_call.1} parent=5 // pred_fallthru
        _
      %p197 = scmp.le.s32.totalorder 1, %s16
      %p198 = scmp.lt.s32.totalorder %s16, 3
      %p199 = pnand %p197, %p198
      %p200 = pneg %p199
      // Predicated region
      $region29: #{tpu_custom_call.1} parent=5 // pred_check
        _
      $region30: #{tpu_custom_call.1} parent=5 // pred_check_branch
        %202 = sbr.rel (%p199) target = $region32
      $region31: #{tpu_custom_call.1} parent=5 // pred_region
        %s203 = ssub.s32 %s16, 1
        %s204 = sand.u32 %s43, 1
        %s205 = scalar_lea.sflag [#allocation3], %s204
        %s206 = sand.u32 %s43, 1
        %s207 = smul.addr %s206, 64
        %s208 = scalar_lea.vmem [#allocation2], %s207
        // Predicated region
        $region33: #{tpu_custom_call.1} parent=31 // pred_check
          %p209 = pneg %p56
        $region34: #{tpu_custom_call.1} parent=31 // pred_check_branch
          %211 = sbr.rel (%p209) target = $region36
        $region35: #{tpu_custom_call.1} parent=31 // pred_region
          %213 = dma.done %s205, 1024
        $region36: #{tpu_custom_call.1} parent=31 // pred_fallthru
          _
        // Predicated region
        $region37: #{tpu_custom_call.1} parent=31 // pred_check
          %p214 = pneg %p77
        $region38: #{tpu_custom_call.1} parent=31 // pred_check_branch
          %216 = sbr.rel (%p214) target = $region40
        $region39: #{tpu_custom_call.1} parent=31 // pred_region
          %218 = dma.done [#allocation6], 512
        $region40: #{tpu_custom_call.1} parent=31 // pred_fallthru
          _
        // Predicated region
        $region41: #{tpu_custom_call.1} parent=31 // pred_check
          %p219 = pneg %p98
        $region42: #{tpu_custom_call.1} parent=31 // pred_check_branch
          %221 = sbr.rel (%p219) target = $region44
        $region43: #{tpu_custom_call.1} parent=31 // pred_region
          %223 = dma.done [#allocation6], 256
        $region44: #{tpu_custom_call.1} parent=31 // pred_fallthru
          _
        %s224 = sand.u32 %s43, 1
        %s225 = scalar_lea.sflag [#allocation3], %s224
        %s226 = sand.u32 %s43, 1
        %s227 = smul.addr %s226, 64
        %s228 = scalar_lea.vmem [#allocation2], %s227
        %p229 = pneg %p56
        %p230 = pneg %p53
        %p231 = pneg %p77
        %p232 = pneg %p74
        %p233 = pneg %p98
        %p234 = pneg %p95
        %p235 = pneg %p126
        %p236 = pneg %p123
        %s237 = sand.u32 %s113, 1
        %s238 = scalar_lea.sflag [#allocation4], %s237
        %s239 = sand.u32 %s113, 1
        %s240 = smul.addr %s239, 128
        %s241 = scalar_lea.vmem [#allocation8], %s240
        %s242 = sadd.s32 %s25, %s26
        %s243 = smul.u32 4, %s242
        %s244 = smul.u32 4, %s26
        %v245 = vld [vmem:[#allocation5] sm:$0xff]
        %v246 = vld [vmem:[#allocation5 + $0x8] sm:$0xff]
        %v247 = vld [vmem:[#allocation5 + $0x10] sm:$0xff]
        %v248 = vld [vmem:[#allocation5 + $0x18] sm:$0xff]
        %v249 = vld [vmem:[#allocation7] sm:$0xff]
        %v250 = vld [vmem:[#allocation7 + $0x8] sm:$0xff]
        %v251 = vld [vmem:[%s208] sm:$0xff]
        %v252 = vld [vmem:[%s208 + $0x8] sm:$0xff]
        %v253 = vld [vmem:[%s208 + $0x10] sm:$0xff]
        %v254 = vld [vmem:[%s208 + $0x18] sm:$0xff]
        %v255 = vld [vmem:[%s208 + $0x20] sm:$0xff]
        %v256 = vld [vmem:[%s208 + $0x28] sm:$0xff]
        %v257 = vld [vmem:[%s208 + $0x30] sm:$0xff]
        %v258 = vld [vmem:[%s208 + $0x38] sm:$0xff]
        %vm259 = vcmask 130048
        %v261 = vsel %vm259, %v251, 0
        %v264 = vsel %vm259, %v252, 0
        %v267 = vsel %vm259, %v253, 0
        %v270 = vsel %vm259, %v254, 0
        %v273 = vsel %vm259, %v255, 0
        %v276 = vsel %vm259, %v256, 0
        %v279 = vsel %vm259, %v257, 0
        %v282 = vsel %vm259, %v258, 0
        %284 = vmatpush.msra.mxu0 0.0
        %285 = vmatpush.msra.mxu0 0.0
        %286 = vmatpush.msra.mxu0 0.0
        %287 = vmatpush.msra.mxu0 0.0
        %288 = vmatpush.msra.mxu0 0.0
        %289 = vmatpush.msra.mxu0 0.0
        %290 = vmatpush.msra.mxu0 0.0
        %291 = vmatpush.msra.mxu0 0.0
        %292 = vmatpush.msra.mxu0 0.0
        %293 = vmatpush.msra.mxu0 0.0
        %294 = vmatpush.msra.mxu0 0.0
        %295 = vmatpush.msra.mxu0 0.0
        %296 = vmatpush.msra.mxu0 0.0
        %297 = vmatpush.msra.mxu0 0.0
        %298 = vmatpush.msra.mxu0 %v247
        %299 = vmatpush.msra.mxu0 %v245
        %300 = vmatmul.f32.gmra.mxu0 %v261
        %v301 = vpop.f32.mrf.mxu0
        %v302 = vadd.f32 0.0, %v301
        %303 = vmatmul.f32.gmra.mxu0 %v264
        %v304 = vpop.f32.mrf.mxu0
        %v305 = vadd.f32 0.0, %v304
        %306 = vmatmul.f32.gmra.mxu0 %v267
        %v307 = vpop.f32.mrf.mxu0
        %v308 = vadd.f32 0.0, %v307
        %309 = vmatmul.f32.gmra.mxu0 %v270
        %v310 = vpop.f32.mrf.mxu0
        %v311 = vadd.f32 0.0, %v310
        %312 = vmatmul.f32.gmra.mxu0 %v273
        %v313 = vpop.f32.mrf.mxu0
        %v314 = vadd.f32 0.0, %v313
        %315 = vmatmul.f32.gmra.mxu0 %v276
        %v316 = vpop.f32.mrf.mxu0
        %v317 = vadd.f32 0.0, %v316
        %318 = vmatmul.f32.gmra.mxu0 %v279
        %v319 = vpop.f32.mrf.mxu0
        %v320 = vadd.f32 0.0, %v319
        %321 = vmatmul.f32.gmra.mxu0 %v282
        %v322 = vpop.f32.mrf.mxu0
        %v323 = vadd.f32 0.0, %v322
        %324 = vdwg.mxu0
        %325 = vmatpush.msra.mxu0 0.0
        %326 = vmatpush.msra.mxu0 0.0
        %327 = vmatpush.msra.mxu0 0.0
        %328 = vmatpush.msra.mxu0 0.0
        %329 = vmatpush.msra.mxu0 0.0
        %330 = vmatpush.msra.mxu0 0.0
        %331 = vmatpush.msra.mxu0 0.0
        %332 = vmatpush.msra.mxu0 0.0
        %333 = vmatpush.msra.mxu0 0.0
        %334 = vmatpush.msra.mxu0 0.0
        %335 = vmatpush.msra.mxu0 0.0
        %336 = vmatpush.msra.mxu0 0.0
        %337 = vmatpush.msra.mxu0 0.0
        %338 = vmatpush.msra.mxu0 0.0
        %339 = vmatpush.msra.mxu0 %v248
        %340 = vmatpush.msra.mxu0 %v246
        %341 = vmatmul.f32.gmra.mxu0 %v261
        %v342 = vpop.f32.mrf.mxu0
        %v343 = vadd.f32 0.0, %v342
        %344 = vmatmul.f32.gmra.mxu0 %v264
        %v345 = vpop.f32.mrf.mxu0
        %v346 = vadd.f32 0.0, %v345
        %347 = vmatmul.f32.gmra.mxu0 %v267
        %v348 = vpop.f32.mrf.mxu0
        %v349 = vadd.f32 0.0, %v348
        %350 = vmatmul.f32.gmra.mxu0 %v270
        %v351 = vpop.f32.mrf.mxu0
        %v352 = vadd.f32 0.0, %v351
        %353 = vmatmul.f32.gmra.mxu0 %v273
        %v354 = vpop.f32.mrf.mxu0
        %v355 = vadd.f32 0.0, %v354
        %356 = vmatmul.f32.gmra.mxu0 %v276
        %v357 = vpop.f32.mrf.mxu0
        %v358 = vadd.f32 0.0, %v357
        %359 = vmatmul.f32.gmra.mxu0 %v279
        %v360 = vpop.f32.mrf.mxu0
        %v361 = vadd.f32 0.0, %v360
        %362 = vmatmul.f32.gmra.mxu0 %v282
        %v363 = vpop.f32.mrf.mxu0
        %v364 = vadd.f32 0.0, %v363
        %365 = vdwg.mxu0
        %v367 = vsel %vm259, %v249, 0
        %v370 = vsel %vm259, %v250, 0
        %372 = vmatpush.msra.mxu0 0.0
        %373 = vmatpush.msra.mxu0 0.0
        %374 = vmatpush.msra.mxu0 0.0
        %375 = vmatpush.msra.mxu0 0.0
        %376 = vmatpush.msra.mxu0 0.0
        %377 = vmatpush.msra.mxu0 0.0
        %378 = vmatpush.msra.mxu0 0.0
        %379 = vmatpush.msra.mxu0 0.0
        %380 = vmatpush.msra.mxu0 0.0
        %381 = vmatpush.msra.mxu0 0.0
        %382 = vmatpush.msra.mxu0 0.0
        %383 = vmatpush.msra.mxu0 0.0
        %384 = vmatpush.msra.mxu0 0.0
        %385 = vmatpush.msra.mxu0 0.0
        %386 = vmatpush.msra.mxu0 %v305
        %387 = vmatpush.msra.mxu0 %v302
        %388 = vmatmul.f32.gmra.mxu0 %v367
        %v389 = vpop.f32.mrf.mxu0
        %v390 = vadd.f32 0.0, %v389
        %391 = vmatmul.f32.gmra.mxu0 %v370
        %v392 = vpop.f32.mrf.mxu0
        %v393 = vadd.f32 0.0, %v392
        %394 = vdwg.mxu0
        %395 = vmatpush.msra.mxu0 0.0
        %396 = vmatpush.msra.mxu0 0.0
        %397 = vmatpush.msra.mxu0 0.0
        %398 = vmatpush.msra.mxu0 0.0
        %399 = vmatpush.msra.mxu0 0.0
        %400 = vmatpush.msra.mxu0 0.0
        %401 = vmatpush.msra.mxu0 0.0
        %402 = vmatpush.msra.mxu0 0.0
        %403 = vmatpush.msra.mxu0 0.0
        %404 = vmatpush.msra.mxu0 0.0
        %405 = vmatpush.msra.mxu0 0.0
        %406 = vmatpush.msra.mxu0 0.0
        %407 = vmatpush.msra.mxu0 0.0
        %408 = vmatpush.msra.mxu0 0.0
        %409 = vmatpush.msra.mxu0 %v346
        %410 = vmatpush.msra.mxu0 %v343
        %411 = vmatmul.f32.gmra.mxu0 %v367
        %v412 = vpop.f32.mrf.mxu0
        %v413 = vadd.f32 0.0, %v412
        %414 = vmatmul.f32.gmra.mxu0 %v370
        %v415 = vpop.f32.mrf.mxu0
        %v416 = vadd.f32 0.0, %v415
        %417 = vdwg.mxu0
        %vm418 = vcmask 64512
        %419 = vst.msk [vmem:[%s241] sm:$0xff] %vm418, %v390
        %s420 = scalar_lea.vmem %s241, 32 [#allocation8]
        %421 = vst.msk [vmem:[%s420] sm:$0xff] %vm418, %v393
        %s422 = scalar_lea.vmem %s241, 64 [#allocation8]
        %423 = vst.msk [vmem:[%s422] sm:$0xff] %vm418, %v413
        %s424 = scalar_lea.vmem %s241, 96 [#allocation8]
        %425 = vst.msk [vmem:[%s424] sm:$0xff] %vm418, %v416
        %426 = vmatpush.msra.mxu0 0.0
        %427 = vmatpush.msra.mxu0 0.0
        %428 = vmatpush.msra.mxu0 0.0
        %429 = vmatpush.msra.mxu0 0.0
        %430 = vmatpush.msra.mxu0 0.0
        %431 = vmatpush.msra.mxu0 0.0
        %432 = vmatpush.msra.mxu0 0.0
        %433 = vmatpush.msra.mxu0 0.0
        %434 = vmatpush.msra.mxu0 0.0
        %435 = vmatpush.msra.mxu0 0.0
        %436 = vmatpush.msra.mxu0 0.0
        %437 = vmatpush.msra.mxu0 0.0
        %438 = vmatpush.msra.mxu0 0.0
        %439 = vmatpush.msra.mxu0 0.0
        %440 = vmatpush.msra.mxu0 %v311
        %441 = vmatpush.msra.mxu0 %v308
        %442 = vmatmul.f32.gmra.mxu0 %v367
        %v443 = vpop.f32.mrf.mxu0
        %v444 = vadd.f32 0.0, %v443
        %445 = vmatmul.f32.gmra.mxu0 %v370
        %v446 = vpop.f32.mrf.mxu0
        %v447 = vadd.f32 0.0, %v446
        %448 = vdwg.mxu0
        %449 = vmatpush.msra.mxu0 0.0
        %450 = vmatpush.msra.mxu0 0.0
        %451 = vmatpush.msra.mxu0 0.0
        %452 = vmatpush.msra.mxu0 0.0
        %453 = vmatpush.msra.mxu0 0.0
        %454 = vmatpush.msra.mxu0 0.0
        %455 = vmatpush.msra.mxu0 0.0
        %456 = vmatpush.msra.mxu0 0.0
        %457 = vmatpush.msra.mxu0 0.0
        %458 = vmatpush.msra.mxu0 0.0
        %459 = vmatpush.msra.mxu0 0.0
        %460 = vmatpush.msra.mxu0 0.0
        %461 = vmatpush.msra.mxu0 0.0
        %462 = vmatpush.msra.mxu0 0.0
        %463 = vmatpush.msra.mxu0 %v352
        %464 = vmatpush.msra.mxu0 %v349
        %465 = vmatmul.f32.gmra.mxu0 %v367
        %v466 = vpop.f32.mrf.mxu0
        %v467 = vadd.f32 0.0, %v466
        %468 = vmatmul.f32.gmra.mxu0 %v370
        %v469 = vpop.f32.mrf.mxu0
        %v470 = vadd.f32 0.0, %v469
        %471 = vdwg.mxu0
        %s472 = scalar_lea.vmem %s241, 8 [#allocation8]
        %473 = vst.msk [vmem:[%s472] sm:$0xff] %vm418, %v444
        %s474 = scalar_lea.vmem %s241, 40 [#allocation8]
        %475 = vst.msk [vmem:[%s474] sm:$0xff] %vm418, %v447
        %s476 = scalar_lea.vmem %s241, 72 [#allocation8]
        %477 = vst.msk [vmem:[%s476] sm:$0xff] %vm418, %v467
        %s478 = scalar_lea.vmem %s241, 104 [#allocation8]
        %479 = vst.msk [vmem:[%s478] sm:$0xff] %vm418, %v470
        %480 = vmatpush.msra.mxu0 0.0
        %481 = vmatpush.msra.mxu0 0.0
        %482 = vmatpush.msra.mxu0 0.0
        %483 = vmatpush.msra.mxu0 0.0
        %484 = vmatpush.msra.mxu0 0.0
        %485 = vmatpush.msra.mxu0 0.0
        %486 = vmatpush.msra.mxu0 0.0
        %487 = vmatpush.msra.mxu0 0.0
        %488 = vmatpush.msra.mxu0 0.0
        %489 = vmatpush.msra.mxu0 0.0
        %490 = vmatpush.msra.mxu0 0.0
        %491 = vmatpush.msra.mxu0 0.0
        %492 = vmatpush.msra.mxu0 0.0
        %493 = vmatpush.msra.mxu0 0.0
        %494 = vmatpush.msra.mxu0 %v317
        %495 = vmatpush.msra.mxu0 %v314
        %496 = vmatmul.f32.gmra.mxu0 %v367
        %v497 = vpop.f32.mrf.mxu0
        %v498 = vadd.f32 0.0, %v497
        %499 = vmatmul.f32.gmra.mxu0 %v370
        %v500 = vpop.f32.mrf.mxu0
        %v501 = vadd.f32 0.0, %v500
        %502 = vdwg.mxu0
        %503 = vmatpush.msra.mxu0 0.0
        %504 = vmatpush.msra.mxu0 0.0
        %505 = vmatpush.msra.mxu0 0.0
        %506 = vmatpush.msra.mxu0 0.0
        %507 = vmatpush.msra.mxu0 0.0
        %508 = vmatpush.msra.mxu0 0.0
        %509 = vmatpush.msra.mxu0 0.0
        %510 = vmatpush.msra.mxu0 0.0
        %511 = vmatpush.msra.mxu0 0.0
        %512 = vmatpush.msra.mxu0 0.0
        %513 = vmatpush.msra.mxu0 0.0
        %514 = vmatpush.msra.mxu0 0.0
        %515 = vmatpush.msra.mxu0 0.0
        %516 = vmatpush.msra.mxu0 0.0
        %517 = vmatpush.msra.mxu0 %v358
        %518 = vmatpush.msra.mxu0 %v355
        %519 = vmatmul.f32.gmra.mxu0 %v367
        %v520 = vpop.f32.mrf.mxu0
        %v521 = vadd.f32 0.0, %v520
        %522 = vmatmul.f32.gmra.mxu0 %v370
        %v523 = vpop.f32.mrf.mxu0
        %v524 = vadd.f32 0.0, %v523
        %525 = vdwg.mxu0
        %s526 = scalar_lea.vmem %s241, 16 [#allocation8]
        %527 = vst.msk [vmem:[%s526] sm:$0xff] %vm418, %v498
        %s528 = scalar_lea.vmem %s241, 48 [#allocation8]
        %529 = vst.msk [vmem:[%s528] sm:$0xff] %vm418, %v501
        %s530 = scalar_lea.vmem %s241, 80 [#allocation8]
        %531 = vst.msk [vmem:[%s530] sm:$0xff] %vm418, %v521
        %s532 = scalar_lea.vmem %s241, 112 [#allocation8]
        %533 = vst.msk [vmem:[%s532] sm:$0xff] %vm418, %v524
        %534 = vmatpush.msra.mxu0 0.0
        %535 = vmatpush.msra.mxu0 0.0
        %536 = vmatpush.msra.mxu0 0.0
        %537 = vmatpush.msra.mxu0 0.0
        %538 = vmatpush.msra.mxu0 0.0
        %539 = vmatpush.msra.mxu0 0.0
        %540 = vmatpush.msra.mxu0 0.0
        %541 = vmatpush.msra.mxu0 0.0
        %542 = vmatpush.msra.mxu0 0.0
        %543 = vmatpush.msra.mxu0 0.0
        %544 = vmatpush.msra.mxu0 0.0
        %545 = vmatpush.msra.mxu0 0.0
        %546 = vmatpush.msra.mxu0 0.0
        %547 = vmatpush.msra.mxu0 0.0
        %548 = vmatpush.msra.mxu0 %v323
        %549 = vmatpush.msra.mxu0 %v320
        %550 = vmatmul.f32.gmra.mxu0 %v367
        %v551 = vpop.f32.mrf.mxu0
        %v552 = vadd.f32 0.0, %v551
        %553 = vmatmul.f32.gmra.mxu0 %v370
        %v554 = vpop.f32.mrf.mxu0
        %v555 = vadd.f32 0.0, %v554
        %556 = vdwg.mxu0
        %557 = vmatpush.msra.mxu0 0.0
        %558 = vmatpush.msra.mxu0 0.0
        %559 = vmatpush.msra.mxu0 0.0
        %560 = vmatpush.msra.mxu0 0.0
        %561 = vmatpush.msra.mxu0 0.0
        %562 = vmatpush.msra.mxu0 0.0
        %563 = vmatpush.msra.mxu0 0.0
        %564 = vmatpush.msra.mxu0 0.0
        %565 = vmatpush.msra.mxu0 0.0
        %566 = vmatpush.msra.mxu0 0.0
        %567 = vmatpush.msra.mxu0 0.0
        %568 = vmatpush.msra.mxu0 0.0
        %569 = vmatpush.msra.mxu0 0.0
        %570 = vmatpush.msra.mxu0 0.0
        %571 = vmatpush.msra.mxu0 %v364
        %572 = vmatpush.msra.mxu0 %v361
        %573 = vmatmul.f32.gmra.mxu0 %v367
        %v574 = vpop.f32.mrf.mxu0
        %v575 = vadd.f32 0.0, %v574
        %576 = vmatmul.f32.gmra.mxu0 %v370
        %v577 = vpop.f32.mrf.mxu0
        %v578 = vadd.f32 0.0, %v577
        %579 = vdwg.mxu0
        %s580 = scalar_lea.vmem %s241, 24 [#allocation8]
        %581 = vst.msk [vmem:[%s580] sm:$0xff] %vm418, %v552
        %s582 = scalar_lea.vmem %s241, 56 [#allocation8]
        %583 = vst.msk [vmem:[%s582] sm:$0xff] %vm418, %v555
        %s584 = scalar_lea.vmem %s241, 88 [#allocation8]
        %585 = vst.msk [vmem:[%s584] sm:$0xff] %vm418, %v575
        %s586 = scalar_lea.vmem %s241, 120 [#allocation8]
        %587 = vst.msk [vmem:[%s586] sm:$0xff] %vm418, %v578
        %s588 = sand.u32 %s113, 1
        %s589 = scalar_lea.sflag [#allocation4], %s588
        %s590 = sand.u32 %s113, 1
        %s591 = smul.addr %s590, 128
        %s592 = scalar_lea.vmem [#allocation8], %s591
        // Predicated region
        $region45: #{tpu_custom_call.1} parent=31 // pred_check
          %p593 = pneg %p123
        $region46: #{tpu_custom_call.1} parent=31 // pred_check_branch
          %595 = sbr.rel (%p593) target = $region48
        $region47: #{tpu_custom_call.1} parent=31 // pred_region
          %s596 = smul.u32 4, %s26
          %598 = vsyncadd %s589, 0
          %s599 = smul.addr %s25, 16
          %s600 = sadd.s32 %s596, %s599
          %s601 = smul.addr %s600, 8
          %s602 = scalar_lea.hbm %s3, %s601
          %s603 = sshll.u32 %s592, 4
          %s604 = int_to_ptr.vmem [resolvable:$true] %s603
          %s605 = sshll.u32 %s602, 4
          %s606 = int_to_ptr.hbm [resolvable:$true] %s605
          %611 = dma.vmem_to_hbm [thread:$0]  %s604, 2048, %s606, %s589, 128, 128, 8
        $region48: #{tpu_custom_call.1} parent=31 // pred_fallthru
          _
      $region32: #{tpu_custom_call.1} parent=5 // pred_fallthru
        _
      %p612 = scmp.le.s32.totalorder 2, %s16
      // Predicated region
      $region49: #{tpu_custom_call.1} parent=5 // pred_check
        %p613 = pneg %p612
      $region50: #{tpu_custom_call.1} parent=5 // pred_check_branch
        %615 = sbr.rel (%p613) target = $region52
      $region51: #{tpu_custom_call.1} parent=5 // pred_region
        %s616 = ssub.s32 %s16, 2
        // Predicated region
        $region53: #{tpu_custom_call.1} parent=51 // pred_check
          %p617 = pneg %p129
        $region54: #{tpu_custom_call.1} parent=51 // pred_check_branch
          %619 = sbr.rel (%p617) target = $region56
        $region55: #{tpu_custom_call.1} parent=51 // pred_region
          %s620 = sand.u32 %s114, 1
          %s621 = scalar_lea.sflag [#allocation4], %s620
          %s622 = sand.u32 %s114, 1
          %s623 = smul.addr %s622, 128
          %s624 = scalar_lea.vmem [#allocation8], %s623
          %626 = dma.done %s621, 2048
        $region56: #{tpu_custom_call.1} parent=51 // pred_fallthru
          _
      $region52: #{tpu_custom_call.1} parent=5 // pred_fallthru
        _
    $region6: #{tpu_custom_call.1} parent=1 // loop_footer
      %s20 = sadd.s32 1, %s16
    $region7: #{tpu_custom_call.1} parent=1 // loop_footer_branch
      %15 = sbr.rel target = $region3
    $region8: #{tpu_custom_call.1} parent=1 // loop_exit
      _
    %627 = vsyncpa [#allocation3], 1
    %s628 = scalar_lea.sflag [#allocation3], 1
    %629 = vsyncpa %s628, 1
    %630 = vsyncpa [#allocation6], 1
    %631 = vsyncpa [#allocation4], 1
    %s632 = scalar_lea.sflag [#allocation4], 1
    %633 = vsyncpa %s632, 1

</llo_original>
